<compile_context>
chip_gen: v7x
topology: tpu7x:2x2x1
jax: 0.10.0
libtpu: 0.0.40
codegen_flags: <defaults>
</compile_context>

<pallas_src>
import jax
import jax.numpy as jnp
import numpy as np
from jax import lax
from jax.experimental import pallas as pl
from jax.experimental.pallas import tpu as pltpu

K = 5                        # conv kernel size
C1, C2 = 10, 20              # conv1 / conv2 output channels
H0 = W0 = 28                 # input spatial
H1 = W1 = H0 - K + 1         # 24  (conv1 out)
P1 = H1 // 2                 # 12  (pool1 out)
H2 = W2 = P1 - K + 1         # 8   (conv2 out)
P2 = H2 // 2                 # 4   (pool2 out)
NOUT = 10
NOUT_PAD = 128               # lane-dense output block; sliced to 10 outside
KW1 = K * W0                 # 140 : merged conv1 contraction length
KW1P = 256                   # conv1 contraction padded to lane width
NC1P = 256                   # conv1 output columns (10*24 = 240) padded
NC2P = 256                   # conv2 output columns (20*8  = 160) padded


# ----------------------- pltpu.roll direction probe -------------------------
_NB_SHIFT_CACHE = {}


def _neighbor_shift(width):
    """Static shift s so that pltpu.roll(z, s, 1)[:, i] == z[:, (i + 1) % width].

    np.roll semantics need s = width - 1; the inverse convention needs s = 1.
    Probed once on-device so the even-lane pool fold is correct either way.
    """
    if width in _NB_SHIFT_CACHE:
        return _NB_SHIFT_CACHE[width]

    def probe_kernel(x_ref, o_ref):
        o_ref[...] = pltpu.roll(x_ref[...], width - 1, 1)

    x = jnp.broadcast_to(jnp.arange(width, dtype=jnp.float32), (8, width))
    out = pl.pallas_call(
        probe_kernel,
        out_shape=jax.ShapeDtypeStruct((8, width), jnp.float32),
    )(x)
    v = float(np.asarray(jax.device_get(out))[0, 0])
    if v == 1.0:                   # np.roll convention: lane i picks up lane i+1
        shift = width - 1
    elif v == float(width - 1):    # inverse convention
        shift = 1
    else:
        raise RuntimeError(f"unexpected pltpu.roll behaviour (lane0={v})")
    _NB_SHIFT_CACHE[width] = shift
    return shift


# ----------------------------- Pallas kernel --------------------------------
def _make_kernel(nb_shift):
    def _net_kernel(xw_ref, t1_ref, b1_ref, g_ref, b2_ref, wf_ref, bfc_ref,
                    out_ref):
        f32, bf16 = jnp.float32, jnp.bfloat16
        B = out_ref.shape[0]          # images in this block
        R6 = 6 * B                    # rows per pool1 parity slab
        R4 = 4 * B                    # rows per conv2 / pool2 slab

        def dot(a, b):
            return jnp.dot(a, b, preferred_element_type=f32)

        def pool_cols(z):
            # 2x2-pool column halves: neighbour max on the VPU/XLU.  Even lanes
            # (chan*W + 2q) hold max(z[.., 2q], z[.., 2q+1]); odd / padding
            # lanes hold finite garbage (maxima of relu outputs / zeros) that
            # is killed by zero rows in the downstream column-fold weights.
            return jnp.maximum(z, pltpu.roll(z, nb_shift, 1))

        # conv1: ONE merged matmul (im2row over kh), M = 24B, K = 256, N = 256.
        a = dot(xw_ref[...], t1_ref[...])                       # (24B, 256) f32

        # pool1 row halves (VPU max) + bias + relu; the 4 conv1-row residues
        # are contiguous sublane slices of `a` (rows ordered residue, j, image).
        bias1 = b1_ref[...]
        z_e = jnp.maximum(jnp.maximum(a[0:R6], a[R6:2 * R6]) + bias1, 0.0)
        z_o = jnp.maximum(jnp.maximum(a[2 * R6:3 * R6], a[3 * R6:4 * R6]) + bias1, 0.0)

        # pool1 column halves are folded into the conv2 band weights -> only a
        # lane neighbour-max here.  Block j of m_e/m_o is pool1 row 2j / 2j+1.
        m_e = pool_cols(z_e).astype(bf16)                       # (6B, 256)
        m_o = pool_cols(z_o).astype(bf16)                       # (6B, 256)

        # conv2: banded over kh, M = 4B (the 4 real rows of each h2 parity).
        # Even output rows h2 = 2p' need pool1 row 2p'+kh; odd rows h2 = 2p'+1
        # need pool1 row 2p'+1+kh; both are contiguous, sublane-aligned static
        # slices of the parity slabs.
        acc_e = acc_o = None
        for kh in range(K):
            g_kh = g_ref[kh]
            src_e, src_o = (m_e, m_o) if kh % 2 == 0 else (m_o, m_e)
            se = (kh // 2) * B
            so = ((kh + 1) // 2) * B
            te = dot(src_e[se:se + R4], g_kh)                   # (4B, 256)
            to = dot(src_o[so:so + R4], g_kh)                   # (4B, 256)
            acc_e = te if acc_e is None else acc_e + te
            acc_o = to if acc_o is None else acc_o + to

        # pool2 row halves + bias + relu, then column halves (lane max); the
        # even-lane selection is folded into the fc weights.
        z2 = jnp.maximum(jnp.maximum(acc_e, acc_o) + b2_ref[...], 0.0)
        m2 = pool_cols(z2).astype(bf16)                         # (4B, 256)

        # fc: row block p of m2 holds pooled spatial row p of every image.
        out = None
        for p in range(P2):
            t = dot(m2[p * B:(p + 1) * B], wf_ref[p])           # (B, 128)
            out = t if out is None else out + t
        out_ref[...] = out + bfc_ref[...]

    return _net_kernel


# ------------------------------ glue / params -------------------------------
def init_params(key):
    k1, k2, k3, k4, k5, k6 = jax.random.split(key, 6)
    w1 = 0.2 * jax.random.normal(k1, (C1, 1, K, K), jnp.float32)
    b1 = 0.1 * jax.random.normal(k2, (C1,), jnp.float32)
    w2 = 0.1 * jax.random.normal(k3, (C2, C1, K, K), jnp.float32)
    b2 = 0.1 * jax.random.normal(k4, (C2,), jnp.float32)
    wfc = 0.05 * jax.random.normal(k5, (NOUT, C2 * P2 * P2), jnp.float32)
    bfc = 0.1 * jax.random.normal(k6, (NOUT,), jnp.float32)
    return w1, b1, w2, b2, wfc, bfc


def prepare_derived(params):
    """Re-lay out weights so conv/pool/fc become batched 2D matmuls.

    The 2x2-pool column selections are folded into the conv2 / fc weights
    (zero rows at odd / padded lanes), so the kernel needs no selector matmuls.
    """
    w1, b1, w2, b2, wfc, bfc = (np.asarray(p) for p in params)

    # conv1 (kh-merged, K padded to 256): T1[kh*28 + j + kw, c*24 + j] = w1[...]
    T1 = np.zeros((KW1P, NC1P), np.float32)
    for kh in range(K):
        for c in range(C1):
            for j in range(W1):
                for kw in range(K):
                    T1[kh * W0 + j + kw, c * W1 + j] = w1[c, 0, kh, kw]
    b1pad = np.zeros((1, NC1P), np.float32)
    for c in range(C1):
        b1pad[0, c * W1:(c + 1) * W1] = b1[c]

    # conv2 (banded over kh) with pool1's even-lane column selection folded in:
    # G[kh][c*24 + 2*(j+kw), o*8 + j] = w2[o, c, kh, kw]
    G = np.zeros((K, NC1P, NC2P), np.float32)
    for kh in range(K):
        for o in range(C2):
            for c in range(C1):
                for j in range(W2):
                    for kw in range(K):
                        G[kh, c * W1 + 2 * (j + kw), o * W2 + j] = w2[o, c, kh, kw]
    b2pad = np.zeros((1, NC2P), np.float32)
    for o in range(C2):
        b2pad[0, o * W2:(o + 1) * W2] = b2[o]

    # fc with pool2's even-lane column selection folded in (PyTorch .view order
    # of the flatten: o*16 + p*4 + q):  WF[p][o*8 + 2q, k] = wfc[k, o*16+p*4+q]
    WF = np.zeros((P2, NC2P, NOUT_PAD), np.float32)
    for p in range(P2):
        for o in range(C2):
            for q in range(P2):
                WF[p, o * W2 + 2 * q, :NOUT] = wfc[:, o * P2 * P2 + p * P2 + q]
    bfc_pad = np.zeros((1, NOUT_PAD), np.float32)
    bfc_pad[0, :NOUT] = bfc

    bf = lambda a: jnp.asarray(a, jnp.bfloat16)   # matmul operands -> bf16
    f3 = lambda a: jnp.asarray(a, jnp.float32)    # biases stay f32
    return [bf(T1), f3(b1pad), bf(G), f3(b2pad), bf(WF), f3(bfc_pad)]


def _round_up(x, m):
    return (x + m - 1) // m * m


def _choose_block(n, batch_block):
    """Images per grid step: multiple of 16, and >= 2 grid blocks when possible
    so both TensorCores of a v7x chip (megacore) get work."""
    b = min(int(batch_block), _round_up(n, 16))
    b = max(16, (b // 16) * 16)
    if n >= 32 and _round_up(n, b) // b < 2:
        b = max(16, _round_up((n + 1) // 2, 16))
    return b


def net_forward(x_nchw, derived, batch_block=128):
    """batch_block=128 is a good default on v6e/v7x; raise to 256 on v6e."""
    x = x_nchw[:, 0].astype(jnp.bfloat16)           # (N, 28, 28); C_in == 1
    N = x.shape[0]
    B = _choose_block(N, batch_block)
    n_pad = _round_up(N, B)
    nb = n_pad // B
    if n_pad != N:
        x = jnp.pad(x, ((0, n_pad - N), (0, 0), (0, 0)))

    # im2row over kh (merges conv1's banded matmuls into one K=140 matmul,
    # zero-padded to 256 lanes), rows ordered (block, residue r, j, image) so
    # the kernel's residue / parity slices are all contiguous and aligned.
    xwin = jnp.stack([x[:, kh:kh + H1, :] for kh in range(K)], axis=2)  # (Np,24,5,28)
    xwin = xwin.reshape(n_pad, H1, KW1)
    xwin = jnp.pad(xwin, ((0, 0), (0, 0), (0, KW1P - KW1)))             # lane align
    xw = (xwin.reshape(nb, B, 6, 4, KW1P)
              .transpose(0, 3, 2, 1, 4)             # (block, r, j, image, K)
              .reshape(nb * 24 * B, KW1P))

    assert NC1P == NC2P
    nb_shift = _neighbor_shift(NC1P)

    def full_spec(a):
        nd = a.ndim
        return pl.BlockSpec(a.shape, lambda n, _nd=nd: (0,) * _nd)

    in_specs = [pl.BlockSpec((24 * B, KW1P), lambda n: (n, 0))]
    in_specs += [full_spec(a) for a in derived]

    # Raise the scoped-VMEM budget only for production-sized blocks; small
    # blocks (tests) stay on the conservative per-generation default.
    vmem_limit = 64 * 1024 * 1024 if B >= 64 else None

    out = pl.pallas_call(
        _make_kernel(nb_shift),
        out_shape=jax.ShapeDtypeStruct((n_pad, NOUT_PAD), jnp.float32),
        grid=(nb,),
        in_specs=in_specs,
        out_specs=pl.BlockSpec((B, NOUT_PAD), lambda n: (n, 0)),
        compiler_params=pltpu.CompilerParams(
            dimension_semantics=("parallel",),
            vmem_limit_bytes=vmem_limit),
    )(xw, *derived)
    return out[:N, :NOUT]


# ----------------------------- pure-JAX reference ----------------------------
def reference_forward(x_nchw, params):
    w1, b1, w2, b2, wfc, bfc = params
    dn = ("NCHW", "OIHW", "NCHW")
    hp = lax.Precision.HIGHEST
    z = lax.conv_general_dilated(x_nchw, w1, (1, 1), "VALID",
                                 dimension_numbers=dn, precision=hp)
    z = jnp.maximum(z + b1[None, :, None, None], 0.0)
    z = lax.reduce_window(z, -jnp.inf, lax.max, (1, 1, 2, 2), (1, 1, 2, 2), "VALID")
    z = lax.conv_general_dilated(z, w2, (1, 1), "VALID",
                                 dimension_numbers=dn, precision=hp)
    z = jnp.maximum(z + b2[None, :, None, None], 0.0)
    z = lax.reduce_window(z, -jnp.inf, lax.max, (1, 1, 2, 2), (1, 1, 2, 2), "VALID")
    flat = z.reshape(z.shape[0], -1)
    return jnp.dot(flat, wfc.T, precision=hp) + bfc[None, :]


if __name__ == "__main__":
    key = jax.random.PRNGKey(0)
    kx, kp = jax.random.split(key)

    N = 50
    x = jax.random.normal(kx, (N, 1, H0, W0), jnp.float32)   # NCHW like PyTorch
    params = init_params(kp)
    derived = prepare_derived(params)

    # With N=50 the block chooser picks B=32 -> 2 parallel grid steps plus tail
    # padding (exercises blocking and the v7x >=2-block rule).
    out = net_forward(x, derived)
    out = jax.block_until_ready(out)

    ref = reference_forward(x, params)
    # bf16 matmul operands vs. the f32 HIGHEST-precision reference -> loose tol.
    np.testing.assert_allclose(np.asarray(out), np.asarray(ref), rtol=2e-2, atol=2e-2)
    print("KERNEL_OK")
</pallas_src>

<mosaic_0001>
module attributes {stable_mosaic.version = 11 : i64} {
  func.func @probe_kernel(%arg0: memref<8x256xf32, #tpu.memory_space<vmem>>, %arg1: memref<8x256xf32, #tpu.memory_space<vmem>>) attributes {dimension_semantics = [], scalar_prefetch = 0 : i64, scratch_operands = 0 : i64, tpu.core_type = #tpu.core_type<tc>} {
    %c0 = arith.constant 0 : index
    %c0_0 = arith.constant 0 : index
    %0 = vector.load %arg0[%c0, %c0_0] : memref<8x256xf32, #tpu.memory_space<vmem>>, vector<8x256xf32>
    %c255_i32 = arith.constant 255 : i32
    %1 = tpu.dynamic_rotate %0 by %c255_i32 dim 1 : vector<8x256xf32>, i32 -> vector<8x256xf32>
    %c0_1 = arith.constant 0 : index
    %c0_2 = arith.constant 0 : index
    %2 = vector.load %arg1[%c0_1, %c0_2] : memref<8x256xf32, #tpu.memory_space<vmem>>, vector<8x256xf32>
    tpu.vector_store %arg1[%c0_1, %c0_2], %1 {strides = array<i32>} : memref<8x256xf32, #tpu.memory_space<vmem>>, vector<8x256xf32>,
    return
  }
}

</mosaic_0001>

<llo_original>
// kernel: tpu_custom_call.1
$region0: #{tpu_custom_call.1}
  #allocation0 [shape = 'u32[]', space=smem, size = 0x4, offset = 0x4, fixed_abs, tag = 'smem constant byte address 0x4 - core index']
  #allocation1 [shape = 'u32[144,128]{1,0:T(1,128)}', space=vmem, size = 0x12000, scoped, tag = 'internal scratch']
  %s0 = inlined_call_operand.hbm [shape: f32[8,256], index: 0, kind: input, shape index: {}]
  %s1 = inlined_call_operand.hbm [shape: f32[8,256], index: 1, kind: output, shape index: {}]
  %s2 = sld [smem:[#allocation0]]
  $region18: #{tpu_custom_call.1} parent=0
    _
  %s4 = ssub.s32 1, %s2
  %s5 = scalar_select 0, %s4, %s2
  $region1: #{tpu_custom_call.1} parent=0
    #allocation2 [shape = 'u8[8192]{0}', space=vmem, size = 0x2000, scoped, tag = 'input window, operand 0, single buffered']
    #allocation3 [shape = 's32[1]{0}', space=sflag, size = 0x4, scoped, tag = 'scoped memory for tpu_custom_call.1']
    #allocation4 [shape = 's32[1]{0}', space=sflag, size = 0x4, scoped, tag = 'scoped memory for tpu_custom_call.1']
    #allocation5 [shape = 'u8[8192]{0}', space=vmem, size = 0x2000, scoped, tag = 'output window, operand 0, single buffered']
    %6 = vsyncpa [#allocation3], 0
    %7 = vsyncpa [#allocation4], 0
    // Predicated region
    $region2: #{tpu_custom_call.1} parent=1 // pred_check
      _
    $region3: #{tpu_custom_call.1} parent=1 // pred_check_branch
      %9 = sbr.rel (0) target = $region5
    $region4: #{tpu_custom_call.1} parent=1 // pred_region
      %s11 = ssub.s32 256, 256
      %12 = vsyncadd [#allocation3], %s11
      %s14 = sshll.u32 [#allocation2], 4
      %s15 = int_to_ptr.vmem [resolvable:$true] %s14
      %17 = dma.hbm_to_vmem [thread:$0]  %s0, 256, %s15, [#allocation3]
    $region5: #{tpu_custom_call.1} parent=1 // pred_fallthru
      _
    // Predicated region
    $region6: #{tpu_custom_call.1} parent=1 // pred_check
      _
    $region7: #{tpu_custom_call.1} parent=1 // pred_check_branch
      %19 = sbr.rel (0) target = $region9
    $region8: #{tpu_custom_call.1} parent=1 // pred_region
      %20 = dma.done [#allocation3], 256
    $region9: #{tpu_custom_call.1} parent=1 // pred_fallthru
      _
    %v21 = vld [vmem:[#allocation2] sm:$0xff]
    %v22 = vld [vmem:[#allocation2 + $0x8] sm:$0xff]
    %23 = vrot.lane.b32.xlu0 %v21, 127
    %v24 = vpop.permute.xlu0 %23
    %25 = vrot.lane.b32.xlu0 %v22, 127
    %v26 = vpop.permute.xlu0 %25
    %v27 = vlaneseq
    %v28 = vand.u32 %v27, 127
    %vm29 = vcmp.lt.s32.totalorder %v28, 127
    %v30 = vsel %vm29, %v24, %v26
    %v31 = vsel %vm29, %v26, %v24
    %32 = vst [vmem:[#allocation5] sm:$0xff] %v30
    %33 = vst [vmem:[#allocation5 + $0x8] sm:$0xff] %v31
    // Predicated region
    $region10: #{tpu_custom_call.1} parent=1 // pred_check
      _
    $region11: #{tpu_custom_call.1} parent=1 // pred_check_branch
      %35 = sbr.rel (0) target = $region13
    $region12: #{tpu_custom_call.1} parent=1 // pred_region
      %s37 = ssub.s32 256, 256
      %38 = vsyncadd [#allocation4], %s37
      %s40 = sshll.u32 [#allocation5], 4
      %s41 = int_to_ptr.vmem [resolvable:$true] %s40
      %43 = dma.vmem_to_hbm [thread:$0]  %s41, 256, %s1, [#allocation4]
    $region13: #{tpu_custom_call.1} parent=1 // pred_fallthru
      _
    // Predicated region
    $region14: #{tpu_custom_call.1} parent=1 // pred_check
      _
    $region15: #{tpu_custom_call.1} parent=1 // pred_check_branch
      %45 = sbr.rel (0) target = $region17
    $region16: #{tpu_custom_call.1} parent=1 // pred_region
      %46 = dma.done [#allocation4], 256
    $region17: #{tpu_custom_call.1} parent=1 // pred_fallthru
      _
    %47 = vsyncpa [#allocation3], 1
    %48 = vsyncpa [#allocation4], 1

</llo_original>
